<compile_context>
chip_gen: v6e
topology: v6e:2x2x1
jax: 0.10.0
libtpu: 0.0.40
codegen_flags: <defaults>
</compile_context>

<pallas_src>
import jax
import jax.numpy as jnp
from jax.experimental import pallas as pl
from jax.experimental.pallas import tpu as pltpu


def _make_kernel(eps: float, gelu_approximate: bool):
    def kernel(x_ref, w_ref, p_ref, o_ref):
        x = x_ref[...]                       # [TM, H_in]    native dtype -> MXU
        w = w_ref[...]                       # [H_in, H_out] pre-transposed, resident
        p = p_ref[...]                       # [3, H_out]    f32: bias / gamma / beta

        # x @ W^T  (w already holds W^T), f32 accumulation on the MXU.
        h = jnp.dot(x, w, preferred_element_type=jnp.float32)   # [TM, H_out] f32
        h = h + p[0:1, :]

        if gelu_approximate:
            # tanh-approximate GELU: transcendental rides the EUP slot.
            c = jnp.float32(0.7978845608028654)                 # sqrt(2/pi)
            h = 0.5 * h * (1.0 + jnp.tanh(c * (h + jnp.float32(0.044715) * h * h * h)))
        else:
            # Exact erf GELU (torch default / HF ACT2FN["gelu"]).
            h = 0.5 * h * (1.0 + jax.lax.erf(h * jnp.float32(0.7071067811865476)))

        # LayerNorm over hidden (last) axis, stats in f32 (biased var, as torch).
        mean = jnp.mean(h, axis=-1, keepdims=True)
        centered = h - mean
        var = jnp.mean(centered * centered, axis=-1, keepdims=True)
        inv = jax.lax.rsqrt(var + jnp.float32(eps))
        o_ref[...] = (centered * inv * p[1:2, :] + p[2:3, :]).astype(o_ref.dtype)

    return kernel


def _round_up(x: int, m: int) -> int:
    return ((x + m - 1) // m) * m


def _vmem_budget_bytes() -> int:
    """Generation-aware VMEM budget: ~96 MiB on v5e/v6e (128 MiB physical),
    ~48 MiB on v7x (64 MiB physical)."""
    phys = 128 << 20
    try:
        info = pltpu.get_tpu_info()
        phys = int(getattr(info, "vmem_capacity_bytes", phys) or phys)
    except Exception:
        pass
    return min((phys * 3) // 4, 100 << 20)


def _min_rows(itemsize: int) -> int:
    return 8 if itemsize >= 4 else (16 if itemsize == 2 else 32)


def _choose_tm(m: int, h: int, x_item: int, out_item: int,
               w_resident_bytes: int, vmem_budget: int, min_rows: int) -> int:
    """Largest VMEM-feasible token tile; prefer >=2 grid steps (v7x megacore)."""
    fixed = w_resident_bytes + 3 * h * 4 + (2 << 20)          # W + params + slack
    avail = max(vmem_budget - fixed, 1 << 20)

    def per_tm(t):  # x double-buffered + out double-buffered + f32 intermediates
        return t * h * (2 * x_item + 2 * out_item + 2 * 4)

    cap = max(min_rows, _round_up(m, min_rows))
    cands = [t for t in (2048, 1024, 512, 256, 128, 64, 32, 16, 8)
             if min_rows <= t <= cap and per_tm(t) <= avail]
    if not cands:
        return min_rows
    for t in cands:                 # descending: largest tile with >=2 grid steps
        if pl.cdiv(m, t) >= 2:
            return t
    return cands[0]                 # whole M fits in one minimal block


def _resident_spec(block_shape):
    """Constant-index operand: stays VMEM-resident, single-buffered when supported."""
    idx = lambda i: (0, 0)
    try:
        return pl.BlockSpec(block_shape, idx, pipeline_mode=pl.Buffered(1))
    except TypeError:               # older API without pipeline_mode kwarg
        return pl.BlockSpec(block_shape, idx)


def bert_prediction_head_transform(hidden_states, dense_w, dense_b,
                                   ln_gamma, ln_beta, eps=1e-12,
                                   matmul_in_bf16=False, gelu_approximate=False):
    """hidden_states: [B, S, H]; dense_w: [H_out, H_in] (PyTorch nn.Linear layout);
    dense_b, ln_gamma, ln_beta: [H].

    matmul_in_bf16: cast f32 matmul inputs to bf16 (f32 accumulation) for MXU speed.
    gelu_approximate: use tanh-GELU (EUP) instead of exact erf.
    Both default to False to preserve torch numerics."""
    B, S, H = hidden_states.shape
    M = B * S

    x2d = hidden_states.reshape(M, H)
    # One-time HBM-side transpose -> MXU-native [H_in, H_out] layout (constant-folds
    # for static weights); no in-kernel transpose of the resident weight.
    w_t = jnp.transpose(dense_w)                            # [H_in, H_out]
    # Pack bias / gamma / beta as a single f32 (3, H) operand.
    params = jnp.stack([dense_b, ln_gamma, ln_beta]).astype(jnp.float32)   # (3, H)

    if matmul_in_bf16 and x2d.dtype == jnp.float32:
        x2d = x2d.astype(jnp.bfloat16)
        w_t = w_t.astype(jnp.bfloat16)

    x_item = jnp.dtype(x2d.dtype).itemsize
    w_item = jnp.dtype(w_t.dtype).itemsize
    out_dtype = hidden_states.dtype
    out_item = jnp.dtype(out_dtype).itemsize

    vmem_budget = _vmem_budget_bytes()
    TM = _choose_tm(M, H, x_item, out_item, H * H * w_item, vmem_budget,
                    _min_rows(x_item))
    grid = (pl.cdiv(M, TM),)        # ragged M -> padded boundary block (row-indep math)

    cost = pl.CostEstimate(
        flops=2 * M * H * H,
        transcendentals=M * H,
        bytes_accessed=(M * H * x_item + H * H * w_item + 3 * H * 4
                        + M * H * out_item),
    )

    out2d = pl.pallas_call(
        _make_kernel(eps, gelu_approximate),
        out_shape=jax.ShapeDtypeStruct((M, H), out_dtype),
        grid_spec=pltpu.PrefetchScalarGridSpec(
            num_scalar_prefetch=0,
            grid=grid,
            in_specs=[
                pl.BlockSpec((TM, H), lambda i: (i, 0)),    # x tile (pipelined)
                _resident_spec((H, H)),                     # W^T  (resident, 1 buffer)
                _resident_spec((3, H)),                     # bias/gamma/beta (resident)
            ],
            out_specs=pl.BlockSpec((TM, H), lambda i: (i, 0)),
        ),
        compiler_params=pltpu.CompilerParams(
            dimension_semantics=("parallel",),              # shard tokens across TCs (v7x)
            vmem_limit_bytes=vmem_budget,
        ),
        cost_estimate=cost,
    )(x2d, w_t, params)

    return out2d.reshape(B, S, H)


if __name__ == "__main__":
    # Small config: batch=2, seq=8, hidden=32  (M=16 -> TM=8, grid=(2,))
    B, S, H = 2, 8, 32
    eps = 1e-12

    key = jax.random.PRNGKey(0)
    k_x, k_w, k_b, k_g, k_beta = jax.random.split(key, 5)

    x = jax.random.normal(k_x, (B, S, H), dtype=jnp.float32)
    dense_w = jax.random.normal(k_w, (H, H), dtype=jnp.float32) * 0.02   # PyTorch [out, in]
    dense_b = jax.random.normal(k_b, (H,), dtype=jnp.float32) * 0.02
    ln_gamma = jnp.ones((H,), dtype=jnp.float32) + 0.1 * jax.random.normal(k_g, (H,), dtype=jnp.float32)
    ln_beta = 0.1 * jax.random.normal(k_beta, (H,), dtype=jnp.float32)

    out = bert_prediction_head_transform(x, dense_w, dense_b, ln_gamma, ln_beta, eps)
    out = jax.block_until_ready(out)

    # Pure-JAX reference check (same math, outside Pallas).
    h_ref = jnp.einsum("bsh,oh->bso", x, dense_w,
                       preferred_element_type=jnp.float32) + dense_b
    h_ref = 0.5 * h_ref * (1.0 + jax.lax.erf(h_ref / jnp.sqrt(2.0)))
    mu = jnp.mean(h_ref, axis=-1, keepdims=True)
    var = jnp.mean((h_ref - mu) ** 2, axis=-1, keepdims=True)
    ref = (h_ref - mu) * jax.lax.rsqrt(var + eps) * ln_gamma + ln_beta

    assert out.shape == (B, S, H)
    assert jnp.allclose(out, ref, atol=1e-5, rtol=1e-5), "mismatch vs reference"
    print("KERNEL_OK")
</pallas_src>

<mosaic_0001>
module attributes {stable_mosaic.version = 11 : i64} {
  func.func @kernel(%arg0: i32, %arg1: memref<8x32xf32, #tpu.memory_space<vmem>>, %arg2: memref<32x32xf32, #tpu.memory_space<vmem>>, %arg3: memref<3x32xf32, #tpu.memory_space<vmem>>, %arg4: memref<8x32xf32, #tpu.memory_space<vmem>>) attributes {dimension_semantics = [#tpu.dimension_semantics<parallel>], iteration_bounds = array<i64: 2>, scalar_prefetch = 0 : i64, scratch_operands = 0 : i64, tpu.core_type = #tpu.core_type<tc>, window_params = [{transform_indices = @transform_0, window_bounds = array<i64: 8, 32>}, {pipeline_mode = #tpu.pipeline_mode<synchronous>, transform_indices = @transform_1, window_bounds = array<i64: 32, 32>}, {pipeline_mode = #tpu.pipeline_mode<synchronous>, transform_indices = @transform_2, window_bounds = array<i64: 3, 32>}, {transform_indices = @transform_3, window_bounds = array<i64: 8, 32>}]} {
    %c0 = arith.constant 0 : index
    %c0_0 = arith.constant 0 : index
    %0 = vector.load %arg1[%c0, %c0_0] : memref<8x32xf32, #tpu.memory_space<vmem>>, vector<8x32xf32>
    %c0_1 = arith.constant 0 : index
    %c0_2 = arith.constant 0 : index
    %1 = vector.load %arg2[%c0_1, %c0_2] : memref<32x32xf32, #tpu.memory_space<vmem>>, vector<32x32xf32>
    %c0_3 = arith.constant 0 : index
    %c0_4 = arith.constant 0 : index
    %2 = vector.load %arg3[%c0_3, %c0_4] : memref<3x32xf32, #tpu.memory_space<vmem>>, vector<3x32xf32>
    %cst = arith.constant dense<0.000000e+00> : vector<8x32xf32>
    %3 = tpu.matmul %0, %1, %cst {dimension_numbers = #tpu.dot_dimension_numbers<[1], [0], [0], [1], [0, 0, 1, 1], [], []>} : vector<8x32xf32>, vector<32x32xf32>, vector<8x32xf32> -> vector<8x32xf32>
    %4 = vector.extract_strided_slice %2 {offsets = [0, 0], sizes = [1, 32], strides = [1, 1]} : vector<3x32xf32> to vector<1x32xf32>
    %5 = vector.broadcast %4 : vector<1x32xf32> to vector<8x32xf32>
    %6 = arith.addf %3, %5 : vector<8x32xf32>
    %cst_5 = arith.constant 5.000000e-01 : f32
    %7 = vector.broadcast %cst_5 : f32 to vector<8x32xf32>
    %8 = arith.mulf %7, %6 : vector<8x32xf32>
    %cst_6 = arith.constant 0.707106769 : f32
    %9 = vector.broadcast %cst_6 : f32 to vector<8x32xf32>
    %10 = arith.mulf %6, %9 : vector<8x32xf32>
    %11 = math.erf %10 : vector<8x32xf32>
    %cst_7 = arith.constant 1.000000e+00 : f32
    %12 = vector.broadcast %cst_7 : f32 to vector<8x32xf32>
    %13 = arith.addf %12, %11 : vector<8x32xf32>
    %14 = arith.mulf %8, %13 : vector<8x32xf32>
    %cst_8 = arith.constant dense<0.000000e+00> : vector<8xf32>
    %15 = vector.multi_reduction <add>, %14, %cst_8 [1] : vector<8x32xf32> to vector<8xf32>
    %16 = vector.shape_cast %15 : vector<8xf32> to vector<8x1xf32>
    %cst_9 = arith.constant 3.200000e+01 : f32
    %17 = vector.broadcast %cst_9 : f32 to vector<8x1xf32>
    %18 = arith.divf %16, %17 : vector<8x1xf32>
    %19 = vector.broadcast %18 : vector<8x1xf32> to vector<8x32xf32>
    %20 = arith.subf %14, %19 : vector<8x32xf32>
    %21 = arith.mulf %20, %20 : vector<8x32xf32>
    %cst_10 = arith.constant dense<0.000000e+00> : vector<8xf32>
    %22 = vector.multi_reduction <add>, %21, %cst_10 [1] : vector<8x32xf32> to vector<8xf32>
    %23 = vector.shape_cast %22 : vector<8xf32> to vector<8x1xf32>
    %cst_11 = arith.constant 3.200000e+01 : f32
    %24 = vector.broadcast %cst_11 : f32 to vector<8x1xf32>
    %25 = arith.divf %23, %24 : vector<8x1xf32>
    %cst_12 = arith.constant 9.99999996E-13 : f32
    %26 = vector.broadcast %cst_12 : f32 to vector<8x1xf32>
    %27 = arith.addf %25, %26 : vector<8x1xf32>
    %28 = math.rsqrt %27 : vector<8x1xf32>
    %29 = vector.broadcast %28 : vector<8x1xf32> to vector<8x32xf32>
    %30 = arith.mulf %20, %29 : vector<8x32xf32>
    %31 = vector.extract_strided_slice %2 {offsets = [1, 0], sizes = [1, 32], strides = [1, 1]} : vector<3x32xf32> to vector<1x32xf32>
    %32 = vector.broadcast %31 : vector<1x32xf32> to vector<8x32xf32>
    %33 = arith.mulf %30, %32 : vector<8x32xf32>
    %34 = vector.extract_strided_slice %2 {offsets = [2, 0], sizes = [1, 32], strides = [1, 1]} : vector<3x32xf32> to vector<1x32xf32>
    %35 = vector.broadcast %34 : vector<1x32xf32> to vector<8x32xf32>
    %36 = arith.addf %33, %35 : vector<8x32xf32>
    %c0_13 = arith.constant 0 : index
    %c0_14 = arith.constant 0 : index
    %37 = vector.load %arg4[%c0_13, %c0_14] : memref<8x32xf32, #tpu.memory_space<vmem>>, vector<8x32xf32>
    tpu.vector_store %arg4[%c0_13, %c0_14], %36 {strides = array<i32>} : memref<8x32xf32, #tpu.memory_space<vmem>>, vector<8x32xf32>,
    return
  }
  func.func @transform_0(%arg0: i32) -> (i32, i32) {
    %c0_i32 = arith.constant 0 : i32
    %c0_i32_0 = arith.constant 0 : i32
    return %arg0, %c0_i32 : i32, i32
  }
  func.func @transform_1(%arg0: i32) -> (i32, i32) {
    %c0_i32 = arith.constant 0 : i32
    %c0_i32_0 = arith.constant 0 : i32
    %c0_i32_1 = arith.constant 0 : i32
    return %c0_i32, %c0_i32_0 : i32, i32
  }
  func.func @transform_2(%arg0: i32) -> (i32, i32) {
    %c0_i32 = arith.constant 0 : i32
    %c0_i32_0 = arith.constant 0 : i32
    %c0_i32_1 = arith.constant 0 : i32
    return %c0_i32, %c0_i32_0 : i32, i32
  }
  func.func @transform_3(%arg0: i32) -> (i32, i32) {
    %c0_i32 = arith.constant 0 : i32
    %c0_i32_0 = arith.constant 0 : i32
    return %arg0, %c0_i32 : i32, i32
  }
}

</mosaic_0001>

<llo_original>
// kernel: tpu_custom_call.1
$region0: #{tpu_custom_call.1}
  #allocation0 [shape = 'u32[]', space=smem, size = 0x4, offset = 0x4, fixed_abs, tag = 'smem constant byte address 0x4 - core index']
  #allocation1 [shape = 'u32[144,128]{1,0:T(1,128)}', space=vmem, size = 0x12000, scoped, tag = 'internal scratch']
  %s0 = inlined_call_operand.hbm [shape: f32[16,32], index: 0, kind: input, shape index: {}]
  %s1 = inlined_call_operand.hbm [shape: f32[32,32], index: 1, kind: input, shape index: {}]
  %s2 = inlined_call_operand.hbm [shape: f32[3,32], index: 2, kind: input, shape index: {}]
  %s3 = inlined_call_operand.hbm [shape: f32[16,32], index: 3, kind: output, shape index: {}]
  %s4 = sld [smem:[#allocation0]]
  $region57: #{tpu_custom_call.1} parent=0
    _
  %s6 = ssub.s32 1, %s4
  %s7 = scalar_select 0, %s6, %s4
  $region1: #{tpu_custom_call.1} parent=0
    #allocation2 [shape = 'u8[8192]{0}', space=vmem, size = 0x2000, scoped, tag = 'input window, operand 0']
    #allocation3 [shape = 's32[2]{0}', space=sflag, size = 0x8, scoped, tag = 'scoped memory for tpu_custom_call.1']
    #allocation4 [shape = 's32[2]{0}', space=sflag, size = 0x8, scoped, tag = 'scoped memory for tpu_custom_call.1']
    #allocation5 [shape = 'u8[16384]{0}', space=vmem, size = 0x4000, scoped, tag = 'input window, operand 1, single buffered']
    #allocation6 [shape = 's32[1]{0}', space=sflag, size = 0x4, scoped, tag = 'scoped memory for tpu_custom_call.1']
    #allocation7 [shape = 'u8[2048]{0}', space=vmem, size = 0x800, scoped, tag = 'input window, operand 2, single buffered']
    #allocation8 [shape = 'u8[8192]{0}', space=vmem, size = 0x2000, scoped, tag = 'output window, operand 0']
    %8 = vsyncpa [#allocation3], 0
    %s9 = scalar_lea.sflag [#allocation3], 1
    %10 = vsyncpa %s9, 0
    %11 = vsyncpa [#allocation6], 0
    %12 = vsyncpa [#allocation4], 0
    %s13 = scalar_lea.sflag [#allocation4], 1
    %14 = vsyncpa %s13, 0
    loop: start=0, step=1, limit=4
    $region2: #{tpu_custom_call.1} parent=1 // loop_pre_header
      _
    $region3: #{tpu_custom_call.1} parent=1 // loop_header
      %s16 = sphi 0, %s20
      %p17 = scmp.ge.s32.totalorder %s16, 4
      %s26 = sphi 0, %s28
      %s29 = sphi 0, %s26
      %s30 = sphi 0, %s29
      %s46 = sphi 0, %s30
      %s50 = sphi 0, %s50
      %s52 = sphi 0, %s50
      %s53 = sphi 0, %s52
      %s67 = sphi 0, %s53
      %s71 = sphi 0, %s71
      %s73 = sphi 0, %s71
      %s74 = sphi 0, %s73
      %s88 = sphi 0, %s74
      %s94 = sphi 0, %s96
      %s97 = sphi 0, %s94
      %s98 = sphi 0, %s97
      %s114 = sphi 0, %s98
    $region4: #{tpu_custom_call.1} parent=1 // loop_header_branch
      %19 = sbr.rel (%p17) target = $region8
    $region5: #{tpu_custom_call.1} parent=1 // loop_body
      %s21 = ssub.s32 %s16, 1
      %s22 = ssub.s32 %s16, 2
      %s23 = sadd.s32 %s16, 1
      %s24 = ssub.s32 %s16, %s23
      %p25 = scmp.eq.s32.totalorder %s24, 0
      %s27 = sadd.s32 %s26, 1
      %s28 = scalar_select %p25, %s26, %s27
      %p31 = pneg %p25
      %p32 = scmp.eq.s32.totalorder %s16, 1
      %p33 = por %p31, %p32
      %p34 = scmp.ne.s32.totalorder %s26, %s29
      %p35 = scmp.eq.s32.totalorder %s16, 0
      %p36 = por %p34, %p35
      %p37 = scmp.ne.s32.totalorder %s26, %s29
      %p38 = scmp.eq.s32.totalorder %s21, 1
      %p39 = por %p37, %p38
      %p40 = scmp.ne.s32.totalorder %s29, %s30
      %p41 = scmp.eq.s32.totalorder %s21, 0
      %p42 = por %p40, %p41
      %p43 = scmp.ne.s32.totalorder %s29, %s30
      %p44 = scmp.eq.s32.totalorder %s22, 1
      %p45 = por %p43, %p44
      %p47 = scmp.ne.s32.totalorder %s30, %s46
      %p48 = scmp.eq.s32.totalorder %s22, 0
      %p49 = por %p47, %p48
      %s51 = sadd.s32 %s50, 1
      %p54 = scmp.eq.s32.totalorder %s16, 1
      %p55 = scmp.ne.s32.totalorder %s50, %s52
      %p56 = scmp.eq.s32.totalorder %s16, 0
      %p57 = por %p55, %p56
      %p58 = scmp.ne.s32.totalorder %s50, %s52
      %p59 = scmp.eq.s32.totalorder %s21, 1
      %p60 = por %p58, %p59
      %p61 = scmp.ne.s32.totalorder %s52, %s53
      %p62 = scmp.eq.s32.totalorder %s21, 0
      %p63 = por %p61, %p62
      %p64 = scmp.ne.s32.totalorder %s52, %s53
      %p65 = scmp.eq.s32.totalorder %s22, 1
      %p66 = por %p64, %p65
      %p68 = scmp.ne.s32.totalorder %s53, %s67
      %p69 = scmp.eq.s32.totalorder %s22, 0
      %p70 = por %p68, %p69
      %s72 = sadd.s32 %s71, 1
      %p75 = scmp.eq.s32.totalorder %s16, 1
      %p76 = scmp.ne.s32.totalorder %s71, %s73
      %p77 = scmp.eq.s32.totalorder %s16, 0
      %p78 = por %p76, %p77
      %p79 = scmp.ne.s32.totalorder %s71, %s73
      %p80 = scmp.eq.s32.totalorder %s21, 1
      %p81 = por %p79, %p80
      %p82 = scmp.ne.s32.totalorder %s73, %s74
      %p83 = scmp.eq.s32.totalorder %s21, 0
      %p84 = por %p82, %p83
      %p85 = scmp.ne.s32.totalorder %s73, %s74
      %p86 = scmp.eq.s32.totalorder %s22, 1
      %p87 = por %p85, %p86
      %p89 = scmp.ne.s32.totalorder %s74, %s88
      %p90 = scmp.eq.s32.totalorder %s22, 0
      %p91 = por %p89, %p90
      %s92 = ssub.s32 %s16, %s23
      %p93 = scmp.eq.s32.totalorder %s92, 0
      %s95 = sadd.s32 %s94, 1
      %s96 = scalar_select %p93, %s94, %s95
      %p99 = pneg %p93
      %p100 = scmp.eq.s32.totalorder %s16, 1
      %p101 = por %p99, %p100
      %p102 = scmp.ne.s32.totalorder %s94, %s97
      %p103 = scmp.eq.s32.totalorder %s16, 0
      %p104 = por %p102, %p103
      %p105 = scmp.ne.s32.totalorder %s94, %s97
      %p106 = scmp.eq.s32.totalorder %s21, 1
      %p107 = por %p105, %p106
      %p108 = scmp.ne.s32.totalorder %s97, %s98
      %p109 = scmp.eq.s32.totalorder %s21, 0
      %p110 = por %p108, %p109
      %p111 = scmp.ne.s32.totalorder %s97, %s98
      %p112 = scmp.eq.s32.totalorder %s22, 1
      %p113 = por %p111, %p112
      %p115 = scmp.ne.s32.totalorder %s98, %s114
      %p116 = scmp.eq.s32.totalorder %s22, 0
      %p117 = por %p115, %p116
      %p118 = scmp.le.s32.totalorder 1, %s16
      %p119 = scmp.lt.s32.totalorder %s16, 3
      %p120 = pnand %p118, %p119
      %p121 = pneg %p120
      // Predicated region
      $region9: #{tpu_custom_call.1} parent=5 // pred_check
        _
      $region10: #{tpu_custom_call.1} parent=5 // pred_check_branch
        %123 = sbr.rel (%p120) target = $region12
      $region11: #{tpu_custom_call.1} parent=5 // pred_region
        %s124 = ssub.s32 %s16, 1
        // Predicated region
        $region13: #{tpu_custom_call.1} parent=11 // pred_check
          %p125 = pneg %p63
        $region14: #{tpu_custom_call.1} parent=11 // pred_check_branch
          %127 = sbr.rel (%p125) target = $region16
        $region15: #{tpu_custom_call.1} parent=11 // pred_region
          %s129 = ssub.s32 512, 512
          %130 = vsyncadd [#allocation6], %s129
          %s131 = sshll.u32 [#allocation5], 4
          %s132 = int_to_ptr.vmem [resolvable:$true] %s131
          %137 = dma.hbm_to_vmem [thread:$0]  %s1, 512, %s132, [#allocation6], 128, 128, 8
        $region16: #{tpu_custom_call.1} parent=11 // pred_fallthru
          _
        // Predicated region
        $region17: #{tpu_custom_call.1} parent=11 // pred_check
          %p138 = pneg %p84
        $region18: #{tpu_custom_call.1} parent=11 // pred_check_branch
          %140 = sbr.rel (%p138) target = $region20
        $region19: #{tpu_custom_call.1} parent=11 // pred_region
          %s142 = ssub.s32 64, 64
          %143 = vsyncadd [#allocation6], %s142
          %s145 = sshll.u32 [#allocation7], 4
          %s146 = int_to_ptr.vmem [resolvable:$true] %s145
          %148 = dma.hbm_to_vmem [thread:$0]  %s2, 64, %s146, [#allocation6]
        $region20: #{tpu_custom_call.1} parent=11 // pred_fallthru
          _
      $region12: #{tpu_custom_call.1} parent=5 // pred_fallthru
        _
      %p149 = scmp.lt.s32.totalorder %s16, 2
      // Predicated region
      $region21: #{tpu_custom_call.1} parent=5 // pred_check
        %p150 = pneg %p149
      $region22: #{tpu_custom_call.1} parent=5 // pred_check_branch
        %152 = sbr.rel (%p150) target = $region24
      $region23: #{tpu_custom_call.1} parent=5 // pred_region
        // Predicated region
        $region25: #{tpu_custom_call.1} parent=23 // pred_check
          %p153 = pneg %p36
        $region26: #{tpu_custom_call.1} parent=23 // pred_check_branch
          %155 = sbr.rel (%p153) target = $region28
        $region27: #{tpu_custom_call.1} parent=23 // pred_region
          %s156 = sand.u32 %s26, 1
          %s157 = scalar_lea.sflag [#allocation3], %s156
          %s158 = sand.u32 %s26, 1
          %s159 = smul.addr %s158, 8
          %s160 = scalar_lea.vmem [#allocation2], %s159
          %s162 = ssub.s32 128, 128
          %163 = vsyncadd %s157, %s162
          %s164 = smul.addr %s16, 128
          %s165 = scalar_lea.hbm %s0, %s164
          %s167 = sshll.u32 %s160, 4
          %s168 = int_to_ptr.vmem [resolvable:$true] %s167
          %170 = dma.hbm_to_vmem [thread:$0]  %s165, 128, %s168, %s157
        $region28: #{tpu_custom_call.1} parent=23 // pred_fallthru
          _
      $region24: #{tpu_custom_call.1} parent=5 // pred_fallthru
        _
      %p171 = scmp.le.s32.totalorder 1, %s16
      %p172 = scmp.lt.s32.totalorder %s16, 3
      %p173 = pnand %p171, %p172
      %p174 = pneg %p173
      // Predicated region
      $region29: #{tpu_custom_call.1} parent=5 // pred_check
        _
      $region30: #{tpu_custom_call.1} parent=5 // pred_check_branch
        %176 = sbr.rel (%p173) target = $region32
      $region31: #{tpu_custom_call.1} parent=5 // pred_region
        %s177 = ssub.s32 %s16, 1
        %s178 = sand.u32 %s29, 1
        %s179 = scalar_lea.sflag [#allocation3], %s178
        %s180 = sand.u32 %s29, 1
        %s181 = smul.addr %s180, 8
        %s182 = scalar_lea.vmem [#allocation2], %s181
        // Predicated region
        $region33: #{tpu_custom_call.1} parent=31 // pred_check
          %p183 = pneg %p42
        $region34: #{tpu_custom_call.1} parent=31 // pred_check_branch
          %185 = sbr.rel (%p183) target = $region36
        $region35: #{tpu_custom_call.1} parent=31 // pred_region
          %186 = dma.done %s179, 128
        $region36: #{tpu_custom_call.1} parent=31 // pred_fallthru
          _
        // Predicated region
        $region37: #{tpu_custom_call.1} parent=31 // pred_check
          %p187 = pneg %p63
        $region38: #{tpu_custom_call.1} parent=31 // pred_check_branch
          %189 = sbr.rel (%p187) target = $region40
        $region39: #{tpu_custom_call.1} parent=31 // pred_region
          %190 = dma.done [#allocation6], 512
        $region40: #{tpu_custom_call.1} parent=31 // pred_fallthru
          _
        // Predicated region
        $region41: #{tpu_custom_call.1} parent=31 // pred_check
          %p191 = pneg %p84
        $region42: #{tpu_custom_call.1} parent=31 // pred_check_branch
          %193 = sbr.rel (%p191) target = $region44
        $region43: #{tpu_custom_call.1} parent=31 // pred_region
          %194 = dma.done [#allocation6], 64
        $region44: #{tpu_custom_call.1} parent=31 // pred_fallthru
          _
        %s195 = sand.u32 %s29, 1
        %s196 = scalar_lea.sflag [#allocation3], %s195
        %s197 = sand.u32 %s29, 1
        %s198 = smul.addr %s197, 8
        %s199 = scalar_lea.vmem [#allocation2], %s198
        %p200 = pneg %p42
        %p201 = pneg %p39
        %p202 = pneg %p63
        %p203 = pneg %p60
        %p204 = pneg %p84
        %p205 = pneg %p81
        %p206 = pneg %p110
        %p207 = pneg %p107
        %s208 = sand.u32 %s97, 1
        %s209 = scalar_lea.sflag [#allocation4], %s208
        %s210 = sand.u32 %s97, 1
        %s211 = smul.addr %s210, 8
        %s212 = scalar_lea.vmem [#allocation8], %s211
        %v213 = vld [vmem:[%s182] sm:$0xff]
        %v214 = vld [vmem:[#allocation5] sm:$0xff]
        %v215 = vld [vmem:[#allocation5 + $0x8] sm:$0xff]
        %v216 = vld [vmem:[#allocation5 + $0x10] sm:$0xff]
        %v217 = vld [vmem:[#allocation5 + $0x18] sm:$0xff]
        %v218 = vld [vmem:[#allocation7] sm:$0x7]
        %v219 = vlaneseq
        %v220 = vshrl.u32 %v219, 7
        %v221 = vsub.s32 0, %v220
        %v222 = vrot.slane %v218, %v221
        %vm223 = vcmask 261120
        %v225 = vsel %vm223, %v213, 0
        %227 = vmatprep.subr.mxu0 0.0
        %228 = vmatpush1.msra.mxu0 0.0
        %229 = vmatprep.subr.mxu0 0.0
        %230 = vmatpush1.msra.mxu0 0.0
        %231 = vmatprep.subr.mxu0 0.0
        %232 = vmatpush1.msra.mxu0 0.0
        %233 = vmatprep.subr.mxu0 0.0
        %234 = vmatpush1.msra.mxu0 0.0
        %235 = vmatprep.subr.mxu0 0.0
        %236 = vmatpush1.msra.mxu0 0.0
        %237 = vmatprep.subr.mxu0 0.0
        %238 = vmatpush1.msra.mxu0 0.0
        %239 = vmatprep.subr.mxu0 0.0
        %240 = vmatpush1.msra.mxu0 0.0
        %241 = vmatprep.subr.mxu0 0.0
        %242 = vmatpush1.msra.mxu0 0.0
        %243 = vmatprep.subr.mxu0 0.0
        %244 = vmatpush1.msra.mxu0 0.0
        %245 = vmatprep.subr.mxu0 0.0
        %246 = vmatpush1.msra.mxu0 0.0
        %247 = vmatprep.subr.mxu0 0.0
        %248 = vmatpush1.msra.mxu0 0.0
        %249 = vmatprep.subr.mxu0 0.0
        %250 = vmatpush1.msra.mxu0 0.0
        %251 = vmatprep.subr.mxu0 0.0
        %252 = vmatpush1.msra.mxu0 %v217
        %253 = vmatprep.subr.mxu0 0.0
        %254 = vmatpush1.msra.mxu0 %v216
        %255 = vmatprep.subr.mxu0 0.0
        %256 = vmatpush1.msra.mxu0 %v215
        %257 = vmatprep.subr.mxu0 0.0
        %258 = vmatpush1.msra.mxu0 %v214
        %259 = vmatprep.subr.mxu0 0.0
        %260 = vmatpush2.msra.mxu0 0.0
        %261 = vmatprep.subr.mxu0 0.0
        %262 = vmatpush2.msra.mxu0 0.0
        %263 = vmatprep.subr.mxu0 0.0
        %264 = vmatpush2.msra.mxu0 0.0
        %265 = vmatprep.subr.mxu0 0.0
        %266 = vmatpush2.msra.mxu0 0.0
        %267 = vmatprep.subr.mxu0 0.0
        %268 = vmatpush2.msra.mxu0 0.0
        %269 = vmatprep.subr.mxu0 0.0
        %270 = vmatpush2.msra.mxu0 0.0
        %271 = vmatprep.subr.mxu0 0.0
        %272 = vmatpush2.msra.mxu0 0.0
        %273 = vmatprep.subr.mxu0 0.0
        %274 = vmatpush2.msra.mxu0 0.0
        %275 = vmatprep.subr.mxu0 0.0
        %276 = vmatpush2.msra.mxu0 0.0
        %277 = vmatprep.subr.mxu0 0.0
        %278 = vmatpush2.msra.mxu0 0.0
        %279 = vmatprep.subr.mxu0 0.0
        %280 = vmatpush2.msra.mxu0 0.0
        %281 = vmatprep.subr.mxu0 0.0
        %282 = vmatpush2.msra.mxu0 0.0
        %283 = vmatprep.subr.mxu0 0.0
        %284 = vmatpush2.msra.mxu0 0.0
        %285 = vmatprep.subr.mxu0 0.0
        %286 = vmatpush2.msra.mxu0 0.0
        %287 = vmatprep.subr.mxu0 0.0
        %288 = vmatpush2.msra.mxu0 0.0
        %289 = vmatprep.subr.mxu0 0.0
        %290 = vmatpush2.msra.mxu0 0.0
        %291 = vmatprep.mubr.f32.mxu0 0.0
        %292 = vmatmul.mubr.f32.gmra.mxu0 %v225
        %v293 = vpop.f32.mrf.mxu0
        %v294 = vadd.f32 %v222, %v293
        %v295 = vpop.f32.mrf.mxu0
        %296 = vdwg.mxu0
        %v297 = vmul.f32 %v294, 0.5
        %v298 = vmul.f32 %v294, 0.70710677
        %v299 = verf.f32.pop %v298
        %v300 = vadd.f32 %v299, 1.0
        %v301 = vmul.f32 %v297, %v300
        %v302 = vsel %vm223, %v301, 0.0
        %303 = vadd.xlane.f32.xlu0 %v302
        %v304 = vpop.xlane.xlu0 %303
        %v305 = vrcp.pop 32.0
        %v306 = vmul.f32 %v304, %v305
        %v307 = vsub.f32 %v301, %v306
        %v308 = vmul.f32 %v307, %v307
        %v309 = vsel %vm223, %v308, 0.0
        %310 = vadd.xlane.f32.xlu0 %v309
        %v311 = vpop.xlane.xlu0 %310
        %v312 = vmul.f32 %v311, %v305
        %v313 = vadd.f32 %v312, 1e-12
        %v314 = vrsqrt.pop %v313
        %v315 = vmul.f32 %v307, %v314
        %v316 = vlaneseq
        %v317 = vshrl.u32 %v316, 7
        %v318 = vsub.s32 1, %v317
        %v319 = vrot.slane %v218, %v318
        %v320 = vmul.f32 %v315, %v319
        %v321 = vlaneseq
        %v322 = vshrl.u32 %v321, 7
        %v323 = vsub.s32 2, %v322
        %v324 = vrot.slane %v218, %v323
        %v325 = vadd.f32 %v320, %v324
        %326 = vst.msk [vmem:[%s212] sm:$0xff] %vm223, %v325
        %s327 = sand.u32 %s97, 1
        %s328 = scalar_lea.sflag [#allocation4], %s327
        %s329 = sand.u32 %s97, 1
        %s330 = smul.addr %s329, 8
        %s331 = scalar_lea.vmem [#allocation8], %s330
        // Predicated region
        $region45: #{tpu_custom_call.1} parent=31 // pred_check
          %p332 = pneg %p107
        $region46: #{tpu_custom_call.1} parent=31 // pred_check_branch
          %334 = sbr.rel (%p332) target = $region48
        $region47: #{tpu_custom_call.1} parent=31 // pred_region
          %s336 = ssub.s32 128, 128
          %337 = vsyncadd %s328, %s336
          %s338 = smul.addr %s21, 128
          %s339 = scalar_lea.hbm %s3, %s338
          %s341 = sshll.u32 %s331, 4
          %s342 = int_to_ptr.vmem [resolvable:$true] %s341
          %344 = dma.vmem_to_hbm [thread:$0]  %s342, 128, %s339, %s328
        $region48: #{tpu_custom_call.1} parent=31 // pred_fallthru
          _
      $region32: #{tpu_custom_call.1} parent=5 // pred_fallthru
        _
      %p345 = scmp.le.s32.totalorder 2, %s16
      // Predicated region
      $region49: #{tpu_custom_call.1} parent=5 // pred_check
        %p346 = pneg %p345
      $region50: #{tpu_custom_call.1} parent=5 // pred_check_branch
        %348 = sbr.rel (%p346) target = $region52
      $region51: #{tpu_custom_call.1} parent=5 // pred_region
        %s349 = ssub.s32 %s16, 2
        // Predicated region
        $region53: #{tpu_custom_call.1} parent=51 // pred_check
          %p350 = pneg %p113
        $region54: #{tpu_custom_call.1} parent=51 // pred_check_branch
          %352 = sbr.rel (%p350) target = $region56
        $region55: #{tpu_custom_call.1} parent=51 // pred_region
          %s353 = sand.u32 %s98, 1
          %s354 = scalar_lea.sflag [#allocation4], %s353
          %s355 = sand.u32 %s98, 1
          %s356 = smul.addr %s355, 8
          %s357 = scalar_lea.vmem [#allocation8], %s356
          %358 = dma.done %s354, 128
        $region56: #{tpu_custom_call.1} parent=51 // pred_fallthru
          _
      $region52: #{tpu_custom_call.1} parent=5 // pred_fallthru
        _
    $region6: #{tpu_custom_call.1} parent=1 // loop_footer
      %s20 = sadd.s32 1, %s16
    $region7: #{tpu_custom_call.1} parent=1 // loop_footer_branch
      %15 = sbr.rel target = $region3
    $region8: #{tpu_custom_call.1} parent=1 // loop_exit
      _
    %359 = vsyncpa [#allocation3], 1
    %s360 = scalar_lea.sflag [#allocation3], 1
    %361 = vsyncpa %s360, 1
    %362 = vsyncpa [#allocation6], 1
    %363 = vsyncpa [#allocation4], 1
    %s364 = scalar_lea.sflag [#allocation4], 1
    %365 = vsyncpa %s364, 1

</llo_original>
